<compile_context>
chip_gen: v6e
topology: v6e:2x2x1
jax: 0.10.0
libtpu: 0.0.40
codegen_flags: <defaults>
</compile_context>

<pallas_src>
import functools

import jax
import jax.numpy as jnp
from jax import lax
from jax.experimental import pallas as pl
from jax.experimental.pallas import tpu as pltpu

EPS = 1e-5


# ---------------------------------------------------------------------------
# Fused kernel, (rows = N*C, H*W) view  -- used when C is too small to fill
# the sublane dimension.  grid = (phase, hw_tile).
# ---------------------------------------------------------------------------
def _bn_fused_rows_kernel(x_ref, w_ref, b_ref, onehot_ref, o_ref,
                          scale_ref, shift_ref, sum_ref, sq_ref,
                          krow_ref, kch_ref,
                          *, count, eps, hw, tile_hw, n):
    p = pl.program_id(0)          # 0 = stats, 1 = apply
    t = pl.program_id(1)          # hw tile
    nt = pl.num_programs(1)
    ragged = (hw % tile_hw) != 0  # static

    @pl.when(p == 0)
    def _stats():
        x = x_ref[...].astype(jnp.float32)                       # (rows, T)
        if ragged:
            col = t * tile_hw + lax.broadcasted_iota(jnp.int32, x.shape, 1)
            valid = col < hw

        @pl.when(t == 0)
        def _init():
            sum_ref[...] = jnp.zeros_like(sum_ref)
            sq_ref[...] = jnp.zeros_like(sq_ref)
            # Shift k ~= per-channel mean of the first tile (exact algebra for
            # any k; a good k removes the E[x^2]-mean^2 cancellation risk).
            xm = jnp.where(valid, x, 0.0) if ragged else x
            row_sum = jnp.sum(xm, axis=-1, keepdims=True)                   # (rows,1)
            k_ch = jnp.sum(row_sum * onehot_ref[...], axis=0, keepdims=True)  # (1,C)
            k_ch = k_ch * (1.0 / (n * min(tile_hw, hw)))
            kch_ref[...] = k_ch
            krow_ref[...] = jnp.sum(onehot_ref[...] * k_ch, axis=1, keepdims=True)

        xs = x - krow_ref[...]
        if ragged:
            xs = jnp.where(valid, xs, 0.0)
        sum_ref[...] += jnp.sum(xs, axis=-1, keepdims=True)
        sq_ref[...] += jnp.sum(xs * xs, axis=-1, keepdims=True)

        @pl.when(t == nt - 1)
        def _finalize():
            inv_count = 1.0 / count
            onehot = onehot_ref[...]                                        # (rows,C)
            s_c = jnp.sum(sum_ref[...] * onehot, axis=0, keepdims=True)     # (1,C)
            q_c = jnp.sum(sq_ref[...] * onehot, axis=0, keepdims=True)      # (1,C)
            mean_s = s_c * inv_count                      # mean of (x - k)
            mean = kch_ref[...] + mean_s
            var = jnp.maximum(q_c * inv_count - mean_s * mean_s, 0.0)
            inv_std = lax.rsqrt(var + eps)
            scale_c = w_ref[...] * inv_std                                  # (1,C)
            shift_c = b_ref[...] - mean * scale_c
            # broadcast back to per-row (exact, elementwise + lane reduce)
            scale_ref[...] = jnp.sum(onehot * scale_c, axis=1, keepdims=True)
            shift_ref[...] = jnp.sum(onehot * shift_c, axis=1, keepdims=True)

    @pl.when(p == 1)
    def _apply():
        x = x_ref[...].astype(jnp.float32)
        o_ref[...] = (x * scale_ref[...] + shift_ref[...]).astype(o_ref.dtype)


# ---------------------------------------------------------------------------
# Fused kernel, (N, C, H*W) view -- used when C >= sublane count.
# grid = (phase, N-block, hw_tile).
# ---------------------------------------------------------------------------
def _bn_fused_nchw_kernel(x_ref, w_ref, b_ref, o_ref,
                          scale_ref, shift_ref, sum_ref, sq_ref, k_ref,
                          *, count, eps, hw, tile_hw, n_block):
    p = pl.program_id(0)
    nb = pl.program_id(1)
    t = pl.program_id(2)
    nbs = pl.num_programs(1)
    nt = pl.num_programs(2)
    ragged = (hw % tile_hw) != 0

    @pl.when(p == 0)
    def _stats():
        x = x_ref[...].astype(jnp.float32)                      # (n_blk, C, T)
        if ragged:
            col = t * tile_hw + lax.broadcasted_iota(jnp.int32, x.shape, 2)
            valid = col < hw

        @pl.when(jnp.logical_and(nb == 0, t == 0))
        def _init():
            sum_ref[...] = jnp.zeros_like(sum_ref)
            sq_ref[...] = jnp.zeros_like(sq_ref)
            xm = jnp.where(valid, x, 0.0) if ragged else x
            ps = jnp.sum(jnp.sum(xm, axis=0), axis=-1, keepdims=True)   # (C,1)
            k_ref[...] = ps * (1.0 / (n_block * min(tile_hw, hw)))

        xs = x - k_ref[...]
        if ragged:
            xs = jnp.where(valid, xs, 0.0)
        sum_ref[...] += jnp.sum(jnp.sum(xs, axis=0), axis=-1, keepdims=True)
        sq_ref[...] += jnp.sum(jnp.sum(xs * xs, axis=0), axis=-1, keepdims=True)

        @pl.when(jnp.logical_and(nb == nbs - 1, t == nt - 1))
        def _finalize():
            inv_count = 1.0 / count
            mean_s = sum_ref[...] * inv_count                            # (C,1)
            mean = k_ref[...] + mean_s
            var = jnp.maximum(sq_ref[...] * inv_count - mean_s * mean_s, 0.0)
            inv_std = lax.rsqrt(var + eps)
            scale = w_ref[...] * inv_std
            scale_ref[...] = scale
            shift_ref[...] = b_ref[...] - mean * scale

    @pl.when(p == 1)
    def _apply():
        x = x_ref[...].astype(jnp.float32)
        o_ref[...] = (x * scale_ref[...] + shift_ref[...]).astype(o_ref.dtype)


# ---------------------------------------------------------------------------
# Wrapper: tiling / dispatch.
# ---------------------------------------------------------------------------
def _vmem_limit_bytes():
    phys = 0
    try:
        phys = int(pltpu.get_tpu_info().vmem_capacity_bytes)
    except Exception:
        phys = 0
    if phys <= 0:
        phys = 64 << 20          # most conservative per-core physical VMEM (v7x)
    return int(max(24 << 20, min(phys * 5 // 8, 80 << 20)))


def _pick_tile_hw(hw, bytes_per_lane, max_block_bytes):
    """Largest HW tile (multiple of 128, or the full extent) within budget."""
    max_lanes = (max_block_bytes // max(1, bytes_per_lane)) // 128 * 128
    max_lanes = max(128, max_lanes)
    if hw <= max_lanes:
        return hw                 # single tile: x stays VMEM-resident -> 1R + 1W
    return max_lanes


def _pick_n_block(n, c, hw, itemsize, max_block_bytes):
    """Largest divisor of N whose (n_blk, C, >=min(hw,512)) block fits."""
    lanes = min(hw, 512)
    for d in range(n, 0, -1):
        if n % d == 0 and d * c * lanes * itemsize <= max_block_bytes:
            return d
    return 1


def dynamic_batch_norm_2d(x_nchw, weight, bias, eps=EPS, tile_hw=None, n_block=None):
    """x_nchw: (N, C, H, W); weight/bias: (max_feature_dim,).  Returns (N, C, H, W)."""
    n, c, h, w = x_nchw.shape
    assert weight.shape[0] >= c and bias.shape[0] >= c
    hw = h * w
    dtype = x_nchw.dtype
    itemsize = jnp.dtype(dtype).itemsize
    count = float(n * hw)
    x_bytes = n * c * hw * itemsize

    vmem_limit = _vmem_limit_bytes()
    # apply phase keeps ~4 big blocks live (in + out, double buffered)
    max_block_bytes = max(1 << 20, vmem_limit // 6)

    sublanes = 8 * (4 // itemsize)          # 8 (f32) / 16 (bf16) / 32 (int8)
    use_rows_view = c < sublanes

    cost = pl.CostEstimate(flops=6 * n * c * hw, transcendentals=2 * c,
                           bytes_accessed=3 * x_bytes)

    if use_rows_view:
        # ---- (N*C, H*W) view: no sublane padding for small C ----------------
        rows = n * c
        x2 = x_nchw.reshape(rows, hw)                       # free view of NCHW
        if tile_hw is None:
            tile_hw = _pick_tile_hw(hw, rows * itemsize, max_block_bytes)
        num_tiles = -(-hw // tile_hw)
        # one-hot channel membership of each row (row r -> channel r % C)
        ch = jnp.tile(jnp.arange(c, dtype=jnp.int32), n)
        onehot = (ch[:, None] == jnp.arange(c, dtype=jnp.int32)[None, :]
                  ).astype(jnp.float32)                     # (rows, C)
        w_row = weight[:c].astype(jnp.float32).reshape(1, c)
        b_row = bias[:c].astype(jnp.float32).reshape(1, c)

        kernel = functools.partial(_bn_fused_rows_kernel, count=count,
                                   eps=float(eps), hw=hw, tile_hw=tile_hw, n=n)
        y2 = pl.pallas_call(
            kernel,
            out_shape=jax.ShapeDtypeStruct((rows, hw), dtype),
            grid_spec=pltpu.PrefetchScalarGridSpec(
                num_scalar_prefetch=0,
                grid=(2, num_tiles),                        # (phase, hw tile)
                in_specs=[
                    pl.BlockSpec((rows, tile_hw), lambda p, t: (0, t)),
                    pl.BlockSpec((1, c), lambda p, t: (0, 0)),
                    pl.BlockSpec((1, c), lambda p, t: (0, 0)),
                    pl.BlockSpec((rows, c), lambda p, t: (0, 0)),
                ],
                # phase 0 parks the (never written) output on block 0 so nothing
                # is flushed; phase 1 streams and writes every block once.
                out_specs=pl.BlockSpec((rows, tile_hw), lambda p, t: (0, t * p)),
                scratch_shapes=[
                    pltpu.VMEM((rows, 1), jnp.float32),     # scale (per row)
                    pltpu.VMEM((rows, 1), jnp.float32),     # shift (per row)
                    pltpu.VMEM((rows, 1), jnp.float32),     # running shifted sum
                    pltpu.VMEM((rows, 1), jnp.float32),     # running shifted sum^2
                    pltpu.VMEM((rows, 1), jnp.float32),     # k (per row)
                    pltpu.VMEM((1, c), jnp.float32),        # k (per channel)
                ],
            ),
            compiler_params=pltpu.CompilerParams(
                dimension_semantics=("arbitrary", "arbitrary"),
                vmem_limit_bytes=vmem_limit),
            cost_estimate=cost,
        )(x2, w_row, b_row, onehot)
        return y2.reshape(n, c, h, w)

    # ---- (N, C, H*W) view with N-blocking for larger C ----------------------
    x3 = x_nchw.reshape(n, c, hw)                           # free view
    if n_block is None:
        n_block = _pick_n_block(n, c, hw, itemsize, max_block_bytes)
    assert n % n_block == 0
    if tile_hw is None:
        tile_hw = _pick_tile_hw(hw, n_block * c * itemsize, max_block_bytes)
    num_tiles = -(-hw // tile_hw)
    n_blocks = n // n_block
    w_col = weight[:c].astype(jnp.float32).reshape(c, 1)
    b_col = bias[:c].astype(jnp.float32).reshape(c, 1)

    kernel = functools.partial(_bn_fused_nchw_kernel, count=count,
                               eps=float(eps), hw=hw, tile_hw=tile_hw,
                               n_block=n_block)
    y3 = pl.pallas_call(
        kernel,
        out_shape=jax.ShapeDtypeStruct((n, c, hw), dtype),
        grid_spec=pltpu.PrefetchScalarGridSpec(
            num_scalar_prefetch=0,
            grid=(2, n_blocks, num_tiles),                  # (phase, N blk, hw tile)
            in_specs=[
                pl.BlockSpec((n_block, c, tile_hw), lambda p, nb, t: (nb, 0, t)),
                pl.BlockSpec((c, 1), lambda p, nb, t: (0, 0)),
                pl.BlockSpec((c, 1), lambda p, nb, t: (0, 0)),
            ],
            out_specs=pl.BlockSpec((n_block, c, tile_hw),
                                   lambda p, nb, t: (nb * p, 0, t * p)),
            scratch_shapes=[
                pltpu.VMEM((c, 1), jnp.float32),            # scale
                pltpu.VMEM((c, 1), jnp.float32),            # shift
                pltpu.VMEM((c, 1), jnp.float32),            # running shifted sum
                pltpu.VMEM((c, 1), jnp.float32),            # running shifted sum^2
                pltpu.VMEM((c, 1), jnp.float32),            # k (per channel)
            ],
        ),
        compiler_params=pltpu.CompilerParams(
            dimension_semantics=("arbitrary", "arbitrary", "arbitrary"),
            vmem_limit_bytes=vmem_limit),
        cost_estimate=cost,
    )(x3, w_col, b_col)
    return y3.reshape(n, c, h, w)


# ---------------------------------------------------------------------------
# Pure-JAX reference (training-mode batch_norm, biased variance).
# ---------------------------------------------------------------------------
def _reference(x_nchw, weight, bias, eps=EPS):
    c = x_nchw.shape[1]
    xf = x_nchw.astype(jnp.float32)
    mean = jnp.mean(xf, axis=(0, 2, 3), keepdims=True)
    var = jnp.mean((xf - mean) ** 2, axis=(0, 2, 3), keepdims=True)
    wc = weight[:c].astype(jnp.float32).reshape(1, c, 1, 1)
    bc = bias[:c].astype(jnp.float32).reshape(1, c, 1, 1)
    return ((xf - mean) * lax.rsqrt(var + eps) * wc + bc).astype(x_nchw.dtype)


if __name__ == "__main__":
    key = jax.random.PRNGKey(0)
    kx, kw, kb = jax.random.split(key, 3)

    max_feature_dim = 8          # BN holds params for up to 8 channels
    weight = 1.0 + 0.1 * jax.random.normal(kw, (max_feature_dim,), jnp.float32)
    bias = 0.1 * jax.random.normal(kb, (max_feature_dim,), jnp.float32)

    cases = [
        # (shape, kwargs): forced small tiles so the multi-tile / multi-block
        # accumulation paths are exercised even at these tiny shapes.
        ((2, 4, 16, 16), dict(tile_hw=128)),                 # C<8 -> rows view, 2 HW tiles
        ((2, 8, 16, 16), dict(tile_hw=128, n_block=1)),      # C>=8 -> NCHW view, 2 N-blocks
        ((2, 4, 20, 20), dict(tile_hw=128)),                 # H*W=400 -> ragged tail masking
    ]
    for shape, kwargs in cases:
        x = jax.random.normal(kx, shape, dtype=jnp.float32)
        y = jax.block_until_ready(dynamic_batch_norm_2d(x, weight, bias, **kwargs))
        y_ref = _reference(x, weight, bias)
        assert y.shape == x.shape
        assert jnp.allclose(y, y_ref, atol=1e-4, rtol=1e-4), f"mismatch for {shape}"

    print("KERNEL_OK")
</pallas_src>

<mosaic_0001>
module attributes {stable_mosaic.version = 11 : i64} {
  func.func @_bn_fused_rows_kernel(%arg0: i32, %arg1: i32, %arg2: memref<8x128xf32, #tpu.memory_space<vmem>>, %arg3: memref<1x4xf32, #tpu.memory_space<vmem>>, %arg4: memref<1x4xf32, #tpu.memory_space<vmem>>, %arg5: memref<8x4xf32, #tpu.memory_space<vmem>>, %arg6: memref<8x128xf32, #tpu.memory_space<vmem>>, %arg7: memref<8x1xf32, #tpu.memory_space<vmem>>, %arg8: memref<8x1xf32, #tpu.memory_space<vmem>>, %arg9: memref<8x1xf32, #tpu.memory_space<vmem>>, %arg10: memref<8x1xf32, #tpu.memory_space<vmem>>, %arg11: memref<8x1xf32, #tpu.memory_space<vmem>>, %arg12: memref<1x4xf32, #tpu.memory_space<vmem>>) attributes {dimension_semantics = [#tpu.dimension_semantics<arbitrary>, #tpu.dimension_semantics<arbitrary>], iteration_bounds = array<i64: 2, 2>, scalar_prefetch = 0 : i64, scratch_operands = 6 : i64, tpu.core_type = #tpu.core_type<tc>, window_params = [{transform_indices = @transform_0, window_bounds = array<i64: 8, 128>}, {pipeline_mode = #tpu.pipeline_mode<synchronous>, transform_indices = @transform_1, window_bounds = array<i64: 1, 4>}, {pipeline_mode = #tpu.pipeline_mode<synchronous>, transform_indices = @transform_2, window_bounds = array<i64: 1, 4>}, {pipeline_mode = #tpu.pipeline_mode<synchronous>, transform_indices = @transform_3, window_bounds = array<i64: 8, 4>}, {transform_indices = @transform_4, window_bounds = array<i64: 8, 128>}]} {
    %c0_i32 = arith.constant 0 : i32
    %0 = arith.cmpi eq, %arg0, %c0_i32 : i32
    %1 = arith.extui %0 : i1 to i32
    %c0_i32_0 = arith.constant 0 : i32
    %2 = arith.cmpi ne, %1, %c0_i32_0 : i32
    scf.if %2 {
      %c0 = arith.constant 0 : index
      %c0_2 = arith.constant 0 : index
      %6 = vector.load %arg2[%c0, %c0_2] : memref<8x128xf32, #tpu.memory_space<vmem>>, vector<8x128xf32>
      %c0_i32_3 = arith.constant 0 : i32
      %7 = arith.cmpi eq, %arg1, %c0_i32_3 : i32
      %8 = arith.extui %7 : i1 to i32
      %c0_i32_4 = arith.constant 0 : i32
      %9 = arith.cmpi ne, %8, %c0_i32_4 : i32
      scf.if %9 {
        %cst_18 = arith.constant 0.000000e+00 : f32
        %27 = vector.broadcast %cst_18 : f32 to vector<8x1xf32>
        %c0_19 = arith.constant 0 : index
        %c0_20 = arith.constant 0 : index
        %28 = vector.load %arg9[%c0_19, %c0_20] : memref<8x1xf32, #tpu.memory_space<vmem>>, vector<8x1xf32>
        tpu.vector_store %arg9[%c0_19, %c0_20], %27 {strides = array<i32>} : memref<8x1xf32, #tpu.memory_space<vmem>>, vector<8x1xf32>,
        %cst_21 = arith.constant 0.000000e+00 : f32
        %29 = vector.broadcast %cst_21 : f32 to vector<8x1xf32>
        %c0_22 = arith.constant 0 : index
        %c0_23 = arith.constant 0 : index
        %30 = vector.load %arg10[%c0_22, %c0_23] : memref<8x1xf32, #tpu.memory_space<vmem>>, vector<8x1xf32>
        tpu.vector_store %arg10[%c0_22, %c0_23], %29 {strides = array<i32>} : memref<8x1xf32, #tpu.memory_space<vmem>>, vector<8x1xf32>,
        %cst_24 = arith.constant dense<0.000000e+00> : vector<8xf32>
        %31 = vector.multi_reduction <add>, %6, %cst_24 [1] : vector<8x128xf32> to vector<8xf32>
        %32 = vector.shape_cast %31 : vector<8xf32> to vector<8x1xf32>
        %c0_25 = arith.constant 0 : index
        %c0_26 = arith.constant 0 : index
        %33 = vector.load %arg5[%c0_25, %c0_26] : memref<8x4xf32, #tpu.memory_space<vmem>>, vector<8x4xf32>
        %34 = vector.broadcast %32 : vector<8x1xf32> to vector<8x4xf32>
        %35 = arith.mulf %34, %33 : vector<8x4xf32>
        %cst_27 = arith.constant dense<0.000000e+00> : vector<4xf32>
        %36 = vector.multi_reduction <add>, %35, %cst_27 [0] : vector<8x4xf32> to vector<4xf32>
        %37 = vector.shape_cast %36 : vector<4xf32> to vector<1x4xf32>
        %cst_28 = arith.constant 3.906250e-03 : f32
        %38 = vector.broadcast %cst_28 : f32 to vector<1x4xf32>
        %39 = arith.mulf %37, %38 : vector<1x4xf32>
        %c0_29 = arith.constant 0 : index
        %c0_30 = arith.constant 0 : index
        %40 = vector.load %arg12[%c0_29, %c0_30] : memref<1x4xf32, #tpu.memory_space<vmem>>, vector<1x4xf32>
        tpu.vector_store %arg12[%c0_29, %c0_30], %39 {strides = array<i32>} : memref<1x4xf32, #tpu.memory_space<vmem>>, vector<1x4xf32>,
        %c0_31 = arith.constant 0 : index
        %c0_32 = arith.constant 0 : index
        %41 = vector.load %arg5[%c0_31, %c0_32] : memref<8x4xf32, #tpu.memory_space<vmem>>, vector<8x4xf32>
        %42 = vector.broadcast %39 : vector<1x4xf32> to vector<8x4xf32>
        %43 = arith.mulf %41, %42 : vector<8x4xf32>
        %cst_33 = arith.constant dense<0.000000e+00> : vector<8xf32>
        %44 = vector.multi_reduction <add>, %43, %cst_33 [1] : vector<8x4xf32> to vector<8xf32>
        %45 = vector.shape_cast %44 : vector<8xf32> to vector<8x1xf32>
        %c0_34 = arith.constant 0 : index
        %c0_35 = arith.constant 0 : index
        %46 = vector.load %arg11[%c0_34, %c0_35] : memref<8x1xf32, #tpu.memory_space<vmem>>, vector<8x1xf32>
        tpu.vector_store %arg11[%c0_34, %c0_35], %45 {strides = array<i32>} : memref<8x1xf32, #tpu.memory_space<vmem>>, vector<8x1xf32>,
      } else {
      }
      %c0_5 = arith.constant 0 : index
      %c0_6 = arith.constant 0 : index
      %10 = vector.load %arg11[%c0_5, %c0_6] : memref<8x1xf32, #tpu.memory_space<vmem>>, vector<8x1xf32>
      %11 = vector.broadcast %10 : vector<8x1xf32> to vector<8x128xf32>
      %12 = arith.subf %6, %11 : vector<8x128xf32>
      %c0_7 = arith.constant 0 : index
      %c0_8 = arith.constant 0 : index
      %13 = vector.load %arg9[%c0_7, %c0_8] : memref<8x1xf32, #tpu.memory_space<vmem>>, vector<8x1xf32>
      %cst = arith.constant dense<0.000000e+00> : vector<8xf32>
      %14 = vector.multi_reduction <add>, %12, %cst [1] : vector<8x128xf32> to vector<8xf32>
      %15 = vector.shape_cast %14 : vector<8xf32> to vector<8x1xf32>
      %16 = arith.addf %13, %15 : vector<8x1xf32>
      %c0_9 = arith.constant 0 : index
      %c0_10 = arith.constant 0 : index
      %17 = vector.load %arg9[%c0_9, %c0_10] : memref<8x1xf32, #tpu.memory_space<vmem>>, vector<8x1xf32>
      tpu.vector_store %arg9[%c0_9, %c0_10], %16 {strides = array<i32>} : memref<8x1xf32, #tpu.memory_space<vmem>>, vector<8x1xf32>,
      %c0_11 = arith.constant 0 : index
      %c0_12 = arith.constant 0 : index
      %18 = vector.load %arg10[%c0_11, %c0_12] : memref<8x1xf32, #tpu.memory_space<vmem>>, vector<8x1xf32>
      %19 = arith.mulf %12, %12 : vector<8x128xf32>
      %cst_13 = arith.constant dense<0.000000e+00> : vector<8xf32>
      %20 = vector.multi_reduction <add>, %19, %cst_13 [1] : vector<8x128xf32> to vector<8xf32>
      %21 = vector.shape_cast %20 : vector<8xf32> to vector<8x1xf32>
      %22 = arith.addf %18, %21 : vector<8x1xf32>
      %c0_14 = arith.constant 0 : index
      %c0_15 = arith.constant 0 : index
      %23 = vector.load %arg10[%c0_14, %c0_15] : memref<8x1xf32, #tpu.memory_space<vmem>>, vector<8x1xf32>
      tpu.vector_store %arg10[%c0_14, %c0_15], %22 {strides = array<i32>} : memref<8x1xf32, #tpu.memory_space<vmem>>, vector<8x1xf32>,
      %c1_i32_16 = arith.constant 1 : i32
      %24 = arith.cmpi eq, %arg1, %c1_i32_16 : i32
      %25 = arith.extui %24 : i1 to i32
      %c0_i32_17 = arith.constant 0 : i32
      %26 = arith.cmpi ne, %25, %c0_i32_17 : i32
      scf.if %26 {
        %c0_18 = arith.constant 0 : index
        %c0_19 = arith.constant 0 : index
        %27 = vector.load %arg5[%c0_18, %c0_19] : memref<8x4xf32, #tpu.memory_space<vmem>>, vector<8x4xf32>
        %c0_20 = arith.constant 0 : index
        %c0_21 = arith.constant 0 : index
        %28 = vector.load %arg9[%c0_20, %c0_21] : memref<8x1xf32, #tpu.memory_space<vmem>>, vector<8x1xf32>
        %29 = vector.broadcast %28 : vector<8x1xf32> to vector<8x4xf32>
        %30 = arith.mulf %29, %27 : vector<8x4xf32>
        %cst_22 = arith.constant dense<0.000000e+00> : vector<4xf32>
        %31 = vector.multi_reduction <add>, %30, %cst_22 [0] : vector<8x4xf32> to vector<4xf32>
        %32 = vector.shape_cast %31 : vector<4xf32> to vector<1x4xf32>
        %c0_23 = arith.constant 0 : index
        %c0_24 = arith.constant 0 : index
        %33 = vector.load %arg10[%c0_23, %c0_24] : memref<8x1xf32, #tpu.memory_space<vmem>>, vector<8x1xf32>
        %34 = vector.broadcast %33 : vector<8x1xf32> to vector<8x4xf32>
        %35 = arith.mulf %34, %27 : vector<8x4xf32>
        %cst_25 = arith.constant dense<0.000000e+00> : vector<4xf32>
        %36 = vector.multi_reduction <add>, %35, %cst_25 [0] : vector<8x4xf32> to vector<4xf32>
        %37 = vector.shape_cast %36 : vector<4xf32> to vector<1x4xf32>
        %cst_26 = arith.constant 0.001953125 : f32
        %38 = vector.broadcast %cst_26 : f32 to vector<1x4xf32>
        %39 = arith.mulf %32, %38 : vector<1x4xf32>
        %c0_27 = arith.constant 0 : index
        %c0_28 = arith.constant 0 : index
        %40 = vector.load %arg12[%c0_27, %c0_28] : memref<1x4xf32, #tpu.memory_space<vmem>>, vector<1x4xf32>
        %41 = arith.addf %40, %39 : vector<1x4xf32>
        %cst_29 = arith.constant 0.001953125 : f32
        %42 = vector.broadcast %cst_29 : f32 to vector<1x4xf32>
        %43 = arith.mulf %37, %42 : vector<1x4xf32>
        %44 = arith.mulf %39, %39 : vector<1x4xf32>
        %45 = arith.subf %43, %44 : vector<1x4xf32>
        %cst_30 = arith.constant 0.000000e+00 : f32
        %46 = vector.broadcast %cst_30 : f32 to vector<1x4xf32>
        %47 = arith.maximumf %45, %46 : vector<1x4xf32>
        %cst_31 = arith.constant 9.99999974E-6 : f32
        %48 = vector.broadcast %cst_31 : f32 to vector<1x4xf32>
        %49 = arith.addf %47, %48 : vector<1x4xf32>
        %50 = math.rsqrt %49 : vector<1x4xf32>
        %c0_32 = arith.constant 0 : index
        %c0_33 = arith.constant 0 : index
        %51 = vector.load %arg3[%c0_32, %c0_33] : memref<1x4xf32, #tpu.memory_space<vmem>>, vector<1x4xf32>
        %52 = arith.mulf %51, %50 : vector<1x4xf32>
        %c0_34 = arith.constant 0 : index
        %c0_35 = arith.constant 0 : index
        %53 = vector.load %arg4[%c0_34, %c0_35] : memref<1x4xf32, #tpu.memory_space<vmem>>, vector<1x4xf32>
        %54 = arith.mulf %41, %52 : vector<1x4xf32>
        %55 = arith.subf %53, %54 : vector<1x4xf32>
        %56 = vector.broadcast %52 : vector<1x4xf32> to vector<8x4xf32>
        %57 = arith.mulf %27, %56 : vector<8x4xf32>
        %cst_36 = arith.constant dense<0.000000e+00> : vector<8xf32>
        %58 = vector.multi_reduction <add>, %57, %cst_36 [1] : vector<8x4xf32> to vector<8xf32>
        %59 = vector.shape_cast %58 : vector<8xf32> to vector<8x1xf32>
        %c0_37 = arith.constant 0 : index
        %c0_38 = arith.constant 0 : index
        %60 = vector.load %arg7[%c0_37, %c0_38] : memref<8x1xf32, #tpu.memory_space<vmem>>, vector<8x1xf32>
        tpu.vector_store %arg7[%c0_37, %c0_38], %59 {strides = array<i32>} : memref<8x1xf32, #tpu.memory_space<vmem>>, vector<8x1xf32>,
        %61 = vector.broadcast %55 : vector<1x4xf32> to vector<8x4xf32>
        %62 = arith.mulf %27, %61 : vector<8x4xf32>
        %cst_39 = arith.constant dense<0.000000e+00> : vector<8xf32>
        %63 = vector.multi_reduction <add>, %62, %cst_39 [1] : vector<8x4xf32> to vector<8xf32>
        %64 = vector.shape_cast %63 : vector<8xf32> to vector<8x1xf32>
        %c0_40 = arith.constant 0 : index
        %c0_41 = arith.constant 0 : index
        %65 = vector.load %arg8[%c0_40, %c0_41] : memref<8x1xf32, #tpu.memory_space<vmem>>, vector<8x1xf32>
        tpu.vector_store %arg8[%c0_40, %c0_41], %64 {strides = array<i32>} : memref<8x1xf32, #tpu.memory_space<vmem>>, vector<8x1xf32>,
      } else {
      }
    } else {
    }
    %c1_i32 = arith.constant 1 : i32
    %3 = arith.cmpi eq, %arg0, %c1_i32 : i32
    %4 = arith.extui %3 : i1 to i32
    %c0_i32_1 = arith.constant 0 : i32
    %5 = arith.cmpi ne, %4, %c0_i32_1 : i32
    scf.if %5 {
      %c0 = arith.constant 0 : index
      %c0_2 = arith.constant 0 : index
      %6 = vector.load %arg2[%c0, %c0_2] : memref<8x128xf32, #tpu.memory_space<vmem>>, vector<8x128xf32>
      %c0_3 = arith.constant 0 : index
      %c0_4 = arith.constant 0 : index
      %7 = vector.load %arg7[%c0_3, %c0_4] : memref<8x1xf32, #tpu.memory_space<vmem>>, vector<8x1xf32>
      %8 = vector.broadcast %7 : vector<8x1xf32> to vector<8x128xf32>
      %9 = arith.mulf %6, %8 : vector<8x128xf32>
      %c0_5 = arith.constant 0 : index
      %c0_6 = arith.constant 0 : index
      %10 = vector.load %arg8[%c0_5, %c0_6] : memref<8x1xf32, #tpu.memory_space<vmem>>, vector<8x1xf32>
      %11 = vector.broadcast %10 : vector<8x1xf32> to vector<8x128xf32>
      %12 = arith.addf %9, %11 : vector<8x128xf32>
      %c0_7 = arith.constant 0 : index
      %c0_8 = arith.constant 0 : index
      %13 = vector.load %arg6[%c0_7, %c0_8] : memref<8x128xf32, #tpu.memory_space<vmem>>, vector<8x128xf32>
      tpu.vector_store %arg6[%c0_7, %c0_8], %12 {strides = array<i32>} : memref<8x128xf32, #tpu.memory_space<vmem>>, vector<8x128xf32>,
    } else {
    }
    return
  }
  func.func @transform_0(%arg0: i32, %arg1: i32) -> (i32, i32) {
    %c0_i32 = arith.constant 0 : i32
    %c0_i32_0 = arith.constant 0 : i32
    return %c0_i32, %arg1 : i32, i32
  }
  func.func @transform_1(%arg0: i32, %arg1: i32) -> (i32, i32) {
    %c0_i32 = arith.constant 0 : i32
    %c0_i32_0 = arith.constant 0 : i32
    %c0_i32_1 = arith.constant 0 : i32
    return %c0_i32, %c0_i32_0 : i32, i32
  }
  func.func @transform_2(%arg0: i32, %arg1: i32) -> (i32, i32) {
    %c0_i32 = arith.constant 0 : i32
    %c0_i32_0 = arith.constant 0 : i32
    %c0_i32_1 = arith.constant 0 : i32
    return %c0_i32, %c0_i32_0 : i32, i32
  }
  func.func @transform_3(%arg0: i32, %arg1: i32) -> (i32, i32) {
    %c0_i32 = arith.constant 0 : i32
    %c0_i32_0 = arith.constant 0 : i32
    %c0_i32_1 = arith.constant 0 : i32
    return %c0_i32, %c0_i32_0 : i32, i32
  }
  func.func @transform_4(%arg0: i32, %arg1: i32) -> (i32, i32) {
    %0 = arith.muli %arg1, %arg0 : i32
    %c0_i32 = arith.constant 0 : i32
    %c0_i32_0 = arith.constant 0 : i32
    return %c0_i32, %0 : i32, i32
  }
}

</mosaic_0001>

<llo_original>
// kernel: tpu_custom_call.1
$region0: #{tpu_custom_call.1}
  #allocation0 [shape = 'u32[]', space=smem, size = 0x4, offset = 0x4, fixed_abs, tag = 'smem constant byte address 0x4 - core index']
  #allocation1 [shape = 'u32[144,128]{1,0:T(1,128)}', space=vmem, size = 0x12000, scoped, tag = 'internal scratch']
  #allocation2 [shape = 'f32[8,1]{1,0:T(8,128)}', space=vmem, size = 0x1000, scoped, tag = 'scratch operand']
  #allocation3 [shape = 'f32[8,1]{1,0:T(8,128)}', space=vmem, size = 0x1000, scoped, tag = 'scratch operand']
  #allocation4 [shape = 'f32[8,1]{1,0:T(8,128)}', space=vmem, size = 0x1000, scoped, tag = 'scratch operand']
  #allocation5 [shape = 'f32[8,1]{1,0:T(8,128)}', space=vmem, size = 0x1000, scoped, tag = 'scratch operand']
  #allocation6 [shape = 'f32[8,1]{1,0:T(8,128)}', space=vmem, size = 0x1000, scoped, tag = 'scratch operand']
  #allocation7 [shape = 'f32[1,4]{1,0:T(1,128)}', space=vmem, size = 0x200, scoped, tag = 'scratch operand']
  %s0 = inlined_call_operand.hbm [shape: f32[8,256], index: 0, kind: input, shape index: {}]
  %s1 = inlined_call_operand.vmem [shape: f32[1,4], index: 1, kind: input, shape index: {}]
  %s2 = inlined_call_operand.vmem [shape: f32[1,4], index: 2, kind: input, shape index: {}]
  %s3 = inlined_call_operand.vmem [shape: f32[8,4], index: 3, kind: input, shape index: {}]
  %s4 = inlined_call_operand.hbm [shape: f32[8,256], index: 4, kind: output, shape index: {}]
  %s5 = sld [smem:[#allocation0]]
  $region69: #{tpu_custom_call.1} parent=0
    _
  %s7 = ssub.s32 1, %s5
  %s8 = scalar_select 0, %s7, %s5
  $region1: #{tpu_custom_call.1} parent=0
    #allocation8 [shape = 'u8[8192]{0}', space=vmem, size = 0x2000, scoped, tag = 'input window, operand 0']
    #allocation9 [shape = 's32[2]{0}', space=sflag, size = 0x8, scoped, tag = 'scoped memory for tpu_custom_call.1']
    #allocation10 [shape = 's32[2]{0}', space=sflag, size = 0x8, scoped, tag = 'scoped memory for tpu_custom_call.1']
    #allocation11 [shape = 'u8[8192]{0}', space=vmem, size = 0x2000, scoped, tag = 'output window, operand 0']
    %9 = vsyncpa [#allocation9], 0
    %s10 = scalar_lea.sflag [#allocation9], 1
    %11 = vsyncpa %s10, 0
    %12 = vsyncpa [#allocation10], 0
    %s13 = scalar_lea.sflag [#allocation10], 1
    %14 = vsyncpa %s13, 0
    loop: start=0, step=1, limit=6
    $region2: #{tpu_custom_call.1} parent=1 // loop_pre_header
      _
    $region3: #{tpu_custom_call.1} parent=1 // loop_header
      %s16 = sphi 0, %s20
      %p17 = scmp.ge.s32.totalorder %s16, 6
      %s23 = sphi 0, %s35
      %s24 = sphi 0, %s31
      %s25 = sphi 0, %s23
      %s26 = sphi 0, %s24
      %s27 = sphi 0, %s25
      %s28 = sphi 0, %s26
      %s38 = sphi 0, %s40
      %s41 = sphi 0, %s38
      %s42 = sphi 0, %s41
      %s58 = sphi 0, %s42
      %s62 = sphi 0, %s62
      %s64 = sphi 0, %s62
      %s65 = sphi 0, %s64
      %s79 = sphi 0, %s65
      %s83 = sphi 0, %s83
      %s85 = sphi 0, %s83
      %s86 = sphi 0, %s85
      %s100 = sphi 0, %s86
      %s104 = sphi 0, %s104
      %s106 = sphi 0, %s104
      %s107 = sphi 0, %s106
      %s121 = sphi 0, %s107
      %s129 = sphi 0, %s131
      %s132 = sphi 0, %s129
      %s133 = sphi 0, %s132
      %s149 = sphi 0, %s133
    $region4: #{tpu_custom_call.1} parent=1 // loop_header_branch
      %19 = sbr.rel (%p17) target = $region8
    $region5: #{tpu_custom_call.1} parent=1 // loop_body
      %s21 = ssub.s32 %s16, 1
      %s22 = ssub.s32 %s16, 2
      %s29 = sadd.s32 1, %s24
      %p30 = scmp.ge.s32.totalorder %s29, 2
      %s31 = scalar_select %p30, 0, %s29
      %s32 = sadd.s32 1, %s23
      %s33 = scalar_select %p30, %s32, %s23
      %p34 = scmp.ge.s32.totalorder %s33, 2
      %s35 = scalar_select %p34, 0, %s33
      %s36 = ssub.s32 %s24, %s31
      %p37 = scmp.eq.s32.totalorder %s36, 0
      %s39 = sadd.s32 %s38, 1
      %s40 = scalar_select %p37, %s38, %s39
      %p43 = pneg %p37
      %p44 = scmp.eq.s32.totalorder %s16, 3
      %p45 = por %p43, %p44
      %p46 = scmp.ne.s32.totalorder %s38, %s41
      %p47 = scmp.eq.s32.totalorder %s16, 0
      %p48 = por %p46, %p47
      %p49 = scmp.ne.s32.totalorder %s38, %s41
      %p50 = scmp.eq.s32.totalorder %s21, 3
      %p51 = por %p49, %p50
      %p52 = scmp.ne.s32.totalorder %s41, %s42
      %p53 = scmp.eq.s32.totalorder %s21, 0
      %p54 = por %p52, %p53
      %p55 = scmp.ne.s32.totalorder %s41, %s42
      %p56 = scmp.eq.s32.totalorder %s22, 3
      %p57 = por %p55, %p56
      %p59 = scmp.ne.s32.totalorder %s42, %s58
      %p60 = scmp.eq.s32.totalorder %s22, 0
      %p61 = por %p59, %p60
      %s63 = sadd.s32 %s62, 1
      %p66 = scmp.eq.s32.totalorder %s16, 3
      %p67 = scmp.ne.s32.totalorder %s62, %s64
      %p68 = scmp.eq.s32.totalorder %s16, 0
      %p69 = por %p67, %p68
      %p70 = scmp.ne.s32.totalorder %s62, %s64
      %p71 = scmp.eq.s32.totalorder %s21, 3
      %p72 = por %p70, %p71
      %p73 = scmp.ne.s32.totalorder %s64, %s65
      %p74 = scmp.eq.s32.totalorder %s21, 0
      %p75 = por %p73, %p74
      %p76 = scmp.ne.s32.totalorder %s64, %s65
      %p77 = scmp.eq.s32.totalorder %s22, 3
      %p78 = por %p76, %p77
      %p80 = scmp.ne.s32.totalorder %s65, %s79
      %p81 = scmp.eq.s32.totalorder %s22, 0
      %p82 = por %p80, %p81
      %s84 = sadd.s32 %s83, 1
      %p87 = scmp.eq.s32.totalorder %s16, 3
      %p88 = scmp.ne.s32.totalorder %s83, %s85
      %p89 = scmp.eq.s32.totalorder %s16, 0
      %p90 = por %p88, %p89
      %p91 = scmp.ne.s32.totalorder %s83, %s85
      %p92 = scmp.eq.s32.totalorder %s21, 3
      %p93 = por %p91, %p92
      %p94 = scmp.ne.s32.totalorder %s85, %s86
      %p95 = scmp.eq.s32.totalorder %s21, 0
      %p96 = por %p94, %p95
      %p97 = scmp.ne.s32.totalorder %s85, %s86
      %p98 = scmp.eq.s32.totalorder %s22, 3
      %p99 = por %p97, %p98
      %p101 = scmp.ne.s32.totalorder %s86, %s100
      %p102 = scmp.eq.s32.totalorder %s22, 0
      %p103 = por %p101, %p102
      %s105 = sadd.s32 %s104, 1
      %p108 = scmp.eq.s32.totalorder %s16, 3
      %p109 = scmp.ne.s32.totalorder %s104, %s106
      %p110 = scmp.eq.s32.totalorder %s16, 0
      %p111 = por %p109, %p110
      %p112 = scmp.ne.s32.totalorder %s104, %s106
      %p113 = scmp.eq.s32.totalorder %s21, 3
      %p114 = por %p112, %p113
      %p115 = scmp.ne.s32.totalorder %s106, %s107
      %p116 = scmp.eq.s32.totalorder %s21, 0
      %p117 = por %p115, %p116
      %p118 = scmp.ne.s32.totalorder %s106, %s107
      %p119 = scmp.eq.s32.totalorder %s22, 3
      %p120 = por %p118, %p119
      %p122 = scmp.ne.s32.totalorder %s107, %s121
      %p123 = scmp.eq.s32.totalorder %s22, 0
      %p124 = por %p122, %p123
      %s125 = smul.u32 %s24, %s23
      %s126 = smul.u32 %s31, %s35
      %s127 = ssub.s32 %s125, %s126
      %p128 = scmp.eq.s32.totalorder %s127, 0
      %s130 = sadd.s32 %s129, 1
      %s131 = scalar_select %p128, %s129, %s130
      %p134 = pneg %p128
      %p135 = scmp.eq.s32.totalorder %s16, 3
      %p136 = por %p134, %p135
      %p137 = scmp.ne.s32.totalorder %s129, %s132
      %p138 = scmp.eq.s32.totalorder %s16, 0
      %p139 = por %p137, %p138
      %p140 = scmp.ne.s32.totalorder %s129, %s132
      %p141 = scmp.eq.s32.totalorder %s21, 3
      %p142 = por %p140, %p141
      %p143 = scmp.ne.s32.totalorder %s132, %s133
      %p144 = scmp.eq.s32.totalorder %s21, 0
      %p145 = por %p143, %p144
      %p146 = scmp.ne.s32.totalorder %s132, %s133
      %p147 = scmp.eq.s32.totalorder %s22, 3
      %p148 = por %p146, %p147
      %p150 = scmp.ne.s32.totalorder %s133, %s149
      %p151 = scmp.eq.s32.totalorder %s22, 0
      %p152 = por %p150, %p151
      %p153 = scmp.le.s32.totalorder 1, %s16
      %p154 = scmp.lt.s32.totalorder %s16, 5
      %p155 = pnand %p153, %p154
      %p156 = pneg %p155
      // Predicated region
      $region9: #{tpu_custom_call.1} parent=5 // pred_check
        _
      $region10: #{tpu_custom_call.1} parent=5 // pred_check_branch
        %158 = sbr.rel (%p155) target = $region12
      $region11: #{tpu_custom_call.1} parent=5 // pred_region
        %s159 = ssub.s32 %s16, 1
        // Predicated region
        $region13: #{tpu_custom_call.1} parent=11 // pred_check
          %p160 = pneg %p75
        $region14: #{tpu_custom_call.1} parent=11 // pred_check_branch
          %162 = sbr.rel (%p160) target = $region16
        $region15: #{tpu_custom_call.1} parent=11 // pred_region
          _
        $region16: #{tpu_custom_call.1} parent=11 // pred_fallthru
          _
        // Predicated region
        $region17: #{tpu_custom_call.1} parent=11 // pred_check
          %p163 = pneg %p96
        $region18: #{tpu_custom_call.1} parent=11 // pred_check_branch
          %165 = sbr.rel (%p163) target = $region20
        $region19: #{tpu_custom_call.1} parent=11 // pred_region
          _
        $region20: #{tpu_custom_call.1} parent=11 // pred_fallthru
          _
        // Predicated region
        $region21: #{tpu_custom_call.1} parent=11 // pred_check
          %p166 = pneg %p117
        $region22: #{tpu_custom_call.1} parent=11 // pred_check_branch
          %168 = sbr.rel (%p166) target = $region24
        $region23: #{tpu_custom_call.1} parent=11 // pred_region
          _
        $region24: #{tpu_custom_call.1} parent=11 // pred_fallthru
          _
      $region12: #{tpu_custom_call.1} parent=5 // pred_fallthru
        _
      %p169 = scmp.lt.s32.totalorder %s16, 4
      // Predicated region
      $region25: #{tpu_custom_call.1} parent=5 // pred_check
        %p170 = pneg %p169
      $region26: #{tpu_custom_call.1} parent=5 // pred_check_branch
        %172 = sbr.rel (%p170) target = $region28
      $region27: #{tpu_custom_call.1} parent=5 // pred_region
        // Predicated region
        $region29: #{tpu_custom_call.1} parent=27 // pred_check
          %p173 = pneg %p48
        $region30: #{tpu_custom_call.1} parent=27 // pred_check_branch
          %175 = sbr.rel (%p173) target = $region32
        $region31: #{tpu_custom_call.1} parent=27 // pred_region
          %s176 = sand.u32 %s38, 1
          %s177 = scalar_lea.sflag [#allocation9], %s176
          %s178 = sand.u32 %s38, 1
          %s179 = smul.addr %s178, 8
          %s180 = scalar_lea.vmem [#allocation8], %s179
          %s182 = ssub.s32 128, 128
          %183 = vsyncadd %s177, %s182
          %s184 = smul.addr %s24, 128
          %s185 = scalar_lea.hbm %s0, %s184
          %s187 = sshll.u32 %s180, 4
          %s188 = int_to_ptr.vmem [resolvable:$true] %s187
          %190 = dma.hbm_to_vmem [thread:$0]  %s185, 128, %s188, %s177
        $region32: #{tpu_custom_call.1} parent=27 // pred_fallthru
          _
      $region28: #{tpu_custom_call.1} parent=5 // pred_fallthru
        _
      %p191 = scmp.le.s32.totalorder 1, %s16
      %p192 = scmp.lt.s32.totalorder %s16, 5
      %p193 = pnand %p191, %p192
      %p194 = pneg %p193
      // Predicated region
      $region33: #{tpu_custom_call.1} parent=5 // pred_check
        _
      $region34: #{tpu_custom_call.1} parent=5 // pred_check_branch
        %196 = sbr.rel (%p193) target = $region36
      $region35: #{tpu_custom_call.1} parent=5 // pred_region
        %s197 = ssub.s32 %s16, 1
        %s198 = sand.u32 %s41, 1
        %s199 = scalar_lea.sflag [#allocation9], %s198
        %s200 = sand.u32 %s41, 1
        %s201 = smul.addr %s200, 8
        %s202 = scalar_lea.vmem [#allocation8], %s201
        // Predicated region
        $region37: #{tpu_custom_call.1} parent=35 // pred_check
          %p203 = pneg %p54
        $region38: #{tpu_custom_call.1} parent=35 // pred_check_branch
          %205 = sbr.rel (%p203) target = $region40
        $region39: #{tpu_custom_call.1} parent=35 // pred_region
          %206 = dma.done %s199, 128
        $region40: #{tpu_custom_call.1} parent=35 // pred_fallthru
          _
        %s207 = sand.u32 %s41, 1
        %s208 = scalar_lea.sflag [#allocation9], %s207
        %s209 = sand.u32 %s41, 1
        %s210 = smul.addr %s209, 8
        %s211 = scalar_lea.vmem [#allocation8], %s210
        %p212 = pneg %p54
        %p213 = pneg %p51
        %p214 = pneg %p75
        %p215 = pneg %p72
        %p216 = pneg %p96
        %p217 = pneg %p93
        %p218 = pneg %p117
        %p219 = pneg %p114
        %p220 = pneg %p145
        %p221 = pneg %p142
        %s222 = sand.u32 %s132, 1
        %s223 = scalar_lea.sflag [#allocation10], %s222
        %s224 = sand.u32 %s132, 1
        %s225 = smul.addr %s224, 8
        %s226 = scalar_lea.vmem [#allocation11], %s225
        %s227 = smul.u32 %s26, %s25
        %p228 = scmp.eq.s32.totalorder %s25, 0
        // Predicated region
        $region41: #{tpu_custom_call.1} parent=35 // pred_check
          %p229 = pneg %p228
        $region42: #{tpu_custom_call.1} parent=35 // pred_check_branch
          %231 = sbr.rel (%p229) target = $region44
        $region43: #{tpu_custom_call.1} parent=35 // pred_region
          %v232 = vld [vmem:[%s202] sm:$0xff]
          %p233 = scmp.eq.s32.totalorder %s26, 0
          // Predicated region
          $region45: #{tpu_custom_call.1} parent=43 // pred_check
            %p234 = pneg %p233
          $region46: #{tpu_custom_call.1} parent=43 // pred_check_branch
            %236 = sbr.rel (%p234) target = $region48
          $region47: #{tpu_custom_call.1} parent=43 // pred_region
            %vm237 = vcmask 7168
            %238 = vst.msk [vmem:[#allocation4] sm:$0xff] %vm237, 0.0
            %239 = vst.msk [vmem:[#allocation5] sm:$0xff] %vm237, 0.0
            %240 = vadd.xlane.f32.xlu0 %v232
            %v241 = vpop.xlane.xlu0 %240
            %v242 = vld [vmem:[%s3] sm:$0xff]
            %v243 = vmul.f32 %v241, %v242
            %vm244 = vcmask 31744
            %v245 = vsel %vm244, %v243, 0.0
            %v246 = vrot.slane %v245, 4
            %v247 = vadd.f32 %v245, %v246
            %v248 = vrot.slane %v247, 2
            %v249 = vadd.f32 %v247, %v248
            %v250 = vrot.slane %v249, 1
            %v251 = vadd.f32 %v249, %v250
            %v252 = vmul.f32 %v251, 0.00390625
            %vm253 = vcmask 24576
            %254 = vst.msk [vmem:[#allocation7] sm:$0x1] %vm253, %v252
            %v255 = vld [vmem:[%s3] sm:$0xff]
            %v256 = vmul.f32 %v255, %v252
            %v257 = vsel %vm244, %v256, 0.0
            %258 = vadd.xlane.f32.xlu0 %v257
            %v259 = vpop.xlane.xlu0 %258
            %260 = vst.msk [vmem:[#allocation6] sm:$0xff] %vm237, %v259
          $region48: #{tpu_custom_call.1} parent=43 // pred_fallthru
            _
          %v261 = vld [vmem:[#allocation6] sm:$0xff]
          %263 = vset.pattern.permute.xlu0 0
          %264 = vperm.xlu0 %263, %v261
          %v265 = vpop.permute.xlu0 %264
          %v267 = vsub.f32 %v232, %v265
          %v268 = vld [vmem:[#allocation4] sm:$0xff]
          %269 = vadd.xlane.f32.xlu0 %v267
          %v270 = vpop.xlane.xlu0 %269
          %v271 = vadd.f32 %v268, %v270
          %vm272 = vcmask 7168
          %273 = vst.msk [vmem:[#allocation4] sm:$0xff] %vm272, %v271
          %v274 = vld [vmem:[#allocation5] sm:$0xff]
          %v275 = vmul.f32 %v267, %v267
          %276 = vadd.xlane.f32.xlu0 %v275
          %v277 = vpop.xlane.xlu0 %276
          %v278 = vadd.f32 %v274, %v277
          %279 = vst.msk [vmem:[#allocation5] sm:$0xff] %vm272, %v278
          %p280 = scmp.eq.s32.totalorder %s26, 1
          // Predicated region
          $region49: #{tpu_custom_call.1} parent=43 // pred_check
            %p281 = pneg %p280
          $region50: #{tpu_custom_call.1} parent=43 // pred_check_branch
            %283 = sbr.rel (%p281) target = $region52
          $region51: #{tpu_custom_call.1} parent=43 // pred_region
            %v284 = vld [vmem:[%s3] sm:$0xff]
            %v285 = vld [vmem:[#allocation4] sm:$0xff]
            %287 = vset.pattern.permute.xlu0 0
            %288 = vperm.xlu0 %287, %v285
            %v289 = vpop.permute.xlu0 %288
            %v291 = vmul.f32 %v289, %v284
            %vm292 = vcmask 31744
            %v293 = vsel %vm292, %v291, 0.0
            %v294 = vrot.slane %v293, 4
            %v295 = vadd.f32 %v293, %v294
            %v296 = vrot.slane %v295, 2
            %v297 = vadd.f32 %v295, %v296
            %v298 = vrot.slane %v297, 1
            %v299 = vadd.f32 %v297, %v298
            %v300 = vld [vmem:[#allocation5] sm:$0xff]
            %302 = vset.pattern.permute.xlu0 0
            %303 = vperm.xlu0 %302, %v300
            %v304 = vpop.permute.xlu0 %303
            %v306 = vmul.f32 %v304, %v284
            %v307 = vsel %vm292, %v306, 0.0
            %v308 = vrot.slane %v307, 4
            %v309 = vadd.f32 %v307, %v308
            %v310 = vrot.slane %v309, 2
            %v311 = vadd.f32 %v309, %v310
            %v312 = vrot.slane %v311, 1
            %v313 = vadd.f32 %v311, %v312
            %v314 = vmul.f32 %v299, 0.001953125
            %v315 = vld [vmem:[#allocation7] sm:$0x1]
            %v316 = vadd.f32 %v315, %v314
            %v317 = vmul.f32 %v313, 0.001953125
            %v318 = vmul.f32 %v314, %v314
            %v319 = vsub.f32 %v317, %v318
            %v320 = vmax.f32 %v319, 0.0
            %v321 = vadd.f32 %v320, 1e-05
            %v322 = vrsqrt.pop %v321
            %v323 = vld [vmem:[%s1] sm:$0x1]
            %v324 = vmul.f32 %v323, %v322
            %v325 = vld [vmem:[%s2] sm:$0x1]
            %v326 = vmul.f32 %v316, %v324
            %v327 = vsub.f32 %v325, %v326
            %v329 = vlaneseq
            %v330 = vshrl.u32 %v329, 7
            %v331 = vsub.s32 0, %v330
            %v332 = vrot.slane %v324, %v331
            %v334 = vmul.f32 %v284, %v332
            %v335 = vsel %vm292, %v334, 0.0
            %336 = vadd.xlane.f32.xlu0 %v335
            %v337 = vpop.xlane.xlu0 %336
            %338 = vst.msk [vmem:[#allocation2] sm:$0xff] %vm272, %v337
            %v340 = vlaneseq
            %v341 = vshrl.u32 %v340, 7
            %v342 = vsub.s32 0, %v341
            %v343 = vrot.slane %v327, %v342
            %v345 = vmul.f32 %v284, %v343
            %v346 = vsel %vm292, %v345, 0.0
            %347 = vadd.xlane.f32.xlu0 %v346
            %v348 = vpop.xlane.xlu0 %347
            %349 = vst.msk [vmem:[#allocation3] sm:$0xff] %vm272, %v348
          $region52: #{tpu_custom_call.1} parent=43 // pred_fallthru
            _
        $region44: #{tpu_custom_call.1} parent=35 // pred_fallthru
          _
        %p350 = scmp.eq.s32.totalorder %s25, 1
        // Predicated region
        $region53: #{tpu_custom_call.1} parent=35 // pred_check
          %p351 = pneg %p350
        $region54: #{tpu_custom_call.1} parent=35 // pred_check_branch
          %353 = sbr.rel (%p351) target = $region56
        $region55: #{tpu_custom_call.1} parent=35 // pred_region
          %v354 = vld [vmem:[%s202] sm:$0xff]
          %v355 = vld [vmem:[#allocation2] sm:$0xff]
          %357 = vset.pattern.permute.xlu0 0
          %358 = vperm.xlu0 %357, %v355
          %v359 = vpop.permute.xlu0 %358
          %v361 = vmul.f32 %v354, %v359
          %v362 = vld [vmem:[#allocation3] sm:$0xff]
          %364 = vset.pattern.permute.xlu0 0
          %365 = vperm.xlu0 %364, %v362
          %v366 = vpop.permute.xlu0 %365
          %v368 = vadd.f32 %v361, %v366
          %369 = vst [vmem:[%s226] sm:$0xff] %v368
        $region56: #{tpu_custom_call.1} parent=35 // pred_fallthru
          _
        %s370 = sand.u32 %s132, 1
        %s371 = scalar_lea.sflag [#allocation10], %s370
        %s372 = sand.u32 %s132, 1
        %s373 = smul.addr %s372, 8
        %s374 = scalar_lea.vmem [#allocation11], %s373
        // Predicated region
        $region57: #{tpu_custom_call.1} parent=35 // pred_check
          %p375 = pneg %p142
        $region58: #{tpu_custom_call.1} parent=35 // pred_check_branch
          %377 = sbr.rel (%p375) target = $region60
        $region59: #{tpu_custom_call.1} parent=35 // pred_region
          %s378 = smul.u32 %s26, %s25
          %s380 = ssub.s32 128, 128
          %381 = vsyncadd %s371, %s380
          %s382 = smul.addr %s378, 128
          %s383 = scalar_lea.hbm %s4, %s382
          %s385 = sshll.u32 %s374, 4
          %s386 = int_to_ptr.vmem [resolvable:$true] %s385
          %388 = dma.vmem_to_hbm [thread:$0]  %s386, 128, %s383, %s371
        $region60: #{tpu_custom_call.1} parent=35 // pred_fallthru
          _
      $region36: #{tpu_custom_call.1} parent=5 // pred_fallthru
        _
      %p389 = scmp.le.s32.totalorder 2, %s16
      // Predicated region
      $region61: #{tpu_custom_call.1} parent=5 // pred_check
        %p390 = pneg %p389
      $region62: #{tpu_custom_call.1} parent=5 // pred_check_branch
        %392 = sbr.rel (%p390) target = $region64
      $region63: #{tpu_custom_call.1} parent=5 // pred_region
        %s393 = ssub.s32 %s16, 2
        // Predicated region
        $region65: #{tpu_custom_call.1} parent=63 // pred_check
          %p394 = pneg %p148
        $region66: #{tpu_custom_call.1} parent=63 // pred_check_branch
          %396 = sbr.rel (%p394) target = $region68
        $region67: #{tpu_custom_call.1} parent=63 // pred_region
          %s397 = sand.u32 %s133, 1
          %s398 = scalar_lea.sflag [#allocation10], %s397
          %s399 = sand.u32 %s133, 1
          %s400 = smul.addr %s399, 8
          %s401 = scalar_lea.vmem [#allocation11], %s400
          %402 = dma.done %s398, 128
        $region68: #{tpu_custom_call.1} parent=63 // pred_fallthru
          _
      $region64: #{tpu_custom_call.1} parent=5 // pred_fallthru
        _
    $region6: #{tpu_custom_call.1} parent=1 // loop_footer
      %s20 = sadd.s32 1, %s16
    $region7: #{tpu_custom_call.1} parent=1 // loop_footer_branch
      %15 = sbr.rel target = $region3
    $region8: #{tpu_custom_call.1} parent=1 // loop_exit
      _
    %403 = vsyncpa [#allocation9], 1
    %s404 = scalar_lea.sflag [#allocation9], 1
    %405 = vsyncpa %s404, 1
    %406 = vsyncpa [#allocation10], 1
    %s407 = scalar_lea.sflag [#allocation10], 1
    %408 = vsyncpa %s407, 1

</llo_original>
